<compile_context>
chip_gen: v6e
topology: v6e:2x2x1
jax: 0.10.0
libtpu: 0.0.40
codegen_flags: <defaults>
</compile_context>

<pallas_src>
import numpy as np
import jax
import jax.numpy as jnp
from jax.experimental import pallas as pl
from jax.experimental.pallas import tpu as pltpu


# ---------------------------------------------------------------------------
# Pallas kernel: fused 1x1 conv + bias on the VPU, single invocation
# ---------------------------------------------------------------------------
def conv1x1_bias_kernel(x_ref, w_ref, b_ref, o_ref):
    # x_ref: (Cin, L)   VMEM  -- L = N*H*W on the lane axis (512 here)
    # w_ref: (Cout, Cin) SMEM -- 1x1 conv weights as scalars
    # b_ref: (Cout,)     SMEM -- bias as scalars
    # o_ref: (Cout, L)   VMEM
    cout, cin = w_ref.shape

    # Hoist the (1, L) channel rows once; reused for every output channel.
    rows = [x_ref[i:i + 1, :] for i in range(cin)]        # each (1, L), lane-dense

    for o in range(cout):                                  # Cout=2: fully unrolled
        # Bias folded into the first multiply-add; pure VPU scalar*vector MACs.
        acc = rows[0] * w_ref[o, 0] + b_ref[o]
        for i in range(1, cin):                            # Cin=4: fully unrolled
            acc = acc + rows[i] * w_ref[o, i]
        o_ref[o:o + 1, :] = acc.astype(o_ref.dtype)        # lane-dense 512-wide store


def out_conv(x_nchw, weight_oihw, bias):
    """OutConv.forward: 1x1 Conv2d with bias.  NCHW in / NCHW out."""
    N, Cin, H, W = x_nchw.shape
    Cout = weight_oihw.shape[0]
    L = N * H * W

    # Fold batch into the lane axis: (N, Cin, H, W) -> (Cin, N*H*W).
    # Tiny wrapper permute (~8 KiB) explicitly sanctioned by the perf review.
    x2 = jnp.transpose(x_nchw.reshape(N, Cin, H * W), (1, 0, 2)).reshape(Cin, L)
    w2 = weight_oihw.reshape(Cout, Cin)                    # (O, I, 1, 1) -> (O, I)
    b1 = bias.reshape(Cout)

    # TODO(synk): at real U-Net OutConv sizes (Cin~64, H*W in the 10^4-10^5
    # range) add a lane-axis grid dimension with >=512-lane tiles (multiple of
    # 128) sized for v7x's 32 MiB scoped VMEM; at this demo size a single
    # full-array block is optimal.
    y = pl.pallas_call(
        conv1x1_bias_kernel,
        out_shape=jax.ShapeDtypeStruct((Cout, L), x_nchw.dtype),
        in_specs=[
            pl.BlockSpec((Cin, L), lambda: (0, 0)),                    # full slab, VMEM
            pl.BlockSpec(memory_space=pltpu.MemorySpace.SMEM),          # weights -> SMEM
            pl.BlockSpec(memory_space=pltpu.MemorySpace.SMEM),          # bias    -> SMEM
        ],
        out_specs=pl.BlockSpec((Cout, L), lambda: (0, 0)),
    )(x2, w2, b1)

    # (Cout, N*H*W) -> (N, Cout, H, W)
    return jnp.transpose(y.reshape(Cout, N, H * W), (1, 0, 2)).reshape(N, Cout, H, W)


# ---------------------------------------------------------------------------
# Pure-JAX reference for correctness checking
# ---------------------------------------------------------------------------
def ref_out_conv(x_nchw, weight_oihw, bias):
    y = jax.lax.conv_general_dilated(
        x_nchw, weight_oihw, window_strides=(1, 1), padding="VALID",
        dimension_numbers=("NCHW", "OIHW", "NCHW"))
    return y + bias[None, :, None, None]


if __name__ == "__main__":
    key = jax.random.PRNGKey(0)
    k_x, k_w, k_b = jax.random.split(key, 3)

    # Small shapes consistent with OutConv at the end of a U-Net:
    # in_channels=4 feature maps -> out_channels=2 classes, 16x16 spatial, batch=2.
    N, in_channels, out_channels, H, W = 2, 4, 2, 16, 16

    x = jax.random.normal(k_x, (N, in_channels, H, W), jnp.float32)
    # nn.Conv2d(in_channels, out_channels, kernel_size=1) parameter shapes:
    weight = 0.1 * jax.random.normal(k_w, (out_channels, in_channels, 1, 1), jnp.float32)
    bias = 0.1 * jax.random.normal(k_b, (out_channels,), jnp.float32)

    out = jax.block_until_ready(out_conv(x, weight, bias))
    assert out.shape == (N, out_channels, H, W), out.shape
    assert out.dtype == x.dtype, out.dtype

    ref = jax.block_until_ready(ref_out_conv(x, weight, bias))
    np.testing.assert_allclose(np.asarray(out), np.asarray(ref), rtol=1e-5, atol=1e-6)

    print("KERNEL_OK")
</pallas_src>

<mosaic_0001>
module attributes {stable_mosaic.version = 11 : i64} {
  func.func @conv1x1_bias_kernel(%arg0: memref<4x512xf32, #tpu.memory_space<vmem>>, %arg1: memref<2x4xf32, #tpu.memory_space<smem>>, %arg2: memref<2xf32, #tpu.memory_space<smem>>, %arg3: memref<2x512xf32, #tpu.memory_space<vmem>>) attributes {dimension_semantics = [], scalar_prefetch = 0 : i64, scratch_operands = 0 : i64, tpu.core_type = #tpu.core_type<tc>} {
    %c0 = arith.constant 0 : index
    %c0_0 = arith.constant 0 : index
    %0 = vector.load %arg0[%c0, %c0_0] : memref<4x512xf32, #tpu.memory_space<vmem>>, vector<1x512xf32>
    %c1 = arith.constant 1 : index
    %c0_1 = arith.constant 0 : index
    %1 = vector.load %arg0[%c1, %c0_1] : memref<4x512xf32, #tpu.memory_space<vmem>>, vector<1x512xf32>
    %c2 = arith.constant 2 : index
    %c0_2 = arith.constant 0 : index
    %2 = vector.load %arg0[%c2, %c0_2] : memref<4x512xf32, #tpu.memory_space<vmem>>, vector<1x512xf32>
    %c3 = arith.constant 3 : index
    %c0_3 = arith.constant 0 : index
    %3 = vector.load %arg0[%c3, %c0_3] : memref<4x512xf32, #tpu.memory_space<vmem>>, vector<1x512xf32>
    %c0_4 = arith.constant 0 : index
    %c0_5 = arith.constant 0 : index
    %4 = memref.load %arg1[%c0_4, %c0_5] : memref<2x4xf32, #tpu.memory_space<smem>>
    %5 = vector.broadcast %4 : f32 to vector<1x512xf32>
    %6 = arith.mulf %0, %5 : vector<1x512xf32>
    %c0_6 = arith.constant 0 : index
    %7 = memref.load %arg2[%c0_6] : memref<2xf32, #tpu.memory_space<smem>>
    %8 = vector.broadcast %7 : f32 to vector<1x512xf32>
    %9 = arith.addf %6, %8 : vector<1x512xf32>
    %c0_7 = arith.constant 0 : index
    %c1_8 = arith.constant 1 : index
    %10 = memref.load %arg1[%c0_7, %c1_8] : memref<2x4xf32, #tpu.memory_space<smem>>
    %11 = vector.broadcast %10 : f32 to vector<1x512xf32>
    %12 = arith.mulf %1, %11 : vector<1x512xf32>
    %13 = arith.addf %9, %12 : vector<1x512xf32>
    %c0_9 = arith.constant 0 : index
    %c2_10 = arith.constant 2 : index
    %14 = memref.load %arg1[%c0_9, %c2_10] : memref<2x4xf32, #tpu.memory_space<smem>>
    %15 = vector.broadcast %14 : f32 to vector<1x512xf32>
    %16 = arith.mulf %2, %15 : vector<1x512xf32>
    %17 = arith.addf %13, %16 : vector<1x512xf32>
    %c0_11 = arith.constant 0 : index
    %c3_12 = arith.constant 3 : index
    %18 = memref.load %arg1[%c0_11, %c3_12] : memref<2x4xf32, #tpu.memory_space<smem>>
    %19 = vector.broadcast %18 : f32 to vector<1x512xf32>
    %20 = arith.mulf %3, %19 : vector<1x512xf32>
    %21 = arith.addf %17, %20 : vector<1x512xf32>
    %c0_13 = arith.constant 0 : index
    %c0_14 = arith.constant 0 : index
    %22 = vector.load %arg3[%c0_13, %c0_14] : memref<2x512xf32, #tpu.memory_space<vmem>>, vector<1x512xf32>
    tpu.vector_store %arg3[%c0_13, %c0_14], %21 {strides = array<i32>} : memref<2x512xf32, #tpu.memory_space<vmem>>, vector<1x512xf32>,
    %c1_15 = arith.constant 1 : index
    %c0_16 = arith.constant 0 : index
    %23 = memref.load %arg1[%c1_15, %c0_16] : memref<2x4xf32, #tpu.memory_space<smem>>
    %24 = vector.broadcast %23 : f32 to vector<1x512xf32>
    %25 = arith.mulf %0, %24 : vector<1x512xf32>
    %c1_17 = arith.constant 1 : index
    %26 = memref.load %arg2[%c1_17] : memref<2xf32, #tpu.memory_space<smem>>
    %27 = vector.broadcast %26 : f32 to vector<1x512xf32>
    %28 = arith.addf %25, %27 : vector<1x512xf32>
    %c1_18 = arith.constant 1 : index
    %c1_19 = arith.constant 1 : index
    %29 = memref.load %arg1[%c1_18, %c1_19] : memref<2x4xf32, #tpu.memory_space<smem>>
    %30 = vector.broadcast %29 : f32 to vector<1x512xf32>
    %31 = arith.mulf %1, %30 : vector<1x512xf32>
    %32 = arith.addf %28, %31 : vector<1x512xf32>
    %c1_20 = arith.constant 1 : index
    %c2_21 = arith.constant 2 : index
    %33 = memref.load %arg1[%c1_20, %c2_21] : memref<2x4xf32, #tpu.memory_space<smem>>
    %34 = vector.broadcast %33 : f32 to vector<1x512xf32>
    %35 = arith.mulf %2, %34 : vector<1x512xf32>
    %36 = arith.addf %32, %35 : vector<1x512xf32>
    %c1_22 = arith.constant 1 : index
    %c3_23 = arith.constant 3 : index
    %37 = memref.load %arg1[%c1_22, %c3_23] : memref<2x4xf32, #tpu.memory_space<smem>>
    %38 = vector.broadcast %37 : f32 to vector<1x512xf32>
    %39 = arith.mulf %3, %38 : vector<1x512xf32>
    %40 = arith.addf %36, %39 : vector<1x512xf32>
    %c1_24 = arith.constant 1 : index
    %c0_25 = arith.constant 0 : index
    %41 = vector.load %arg3[%c1_24, %c0_25] : memref<2x512xf32, #tpu.memory_space<vmem>>, vector<1x512xf32>
    tpu.vector_store %arg3[%c1_24, %c0_25], %40 {strides = array<i32>} : memref<2x512xf32, #tpu.memory_space<vmem>>, vector<1x512xf32>,
    return
  }
}

</mosaic_0001>

<llo_original>
// kernel: tpu_custom_call.1
$region0: #{tpu_custom_call.1}
  #allocation0 [shape = 'u32[]', space=smem, size = 0x4, offset = 0x4, fixed_abs, tag = 'smem constant byte address 0x4 - core index']
  #allocation1 [shape = 'u32[144,128]{1,0:T(1,128)}', space=vmem, size = 0x12000, scoped, tag = 'internal scratch']
  %s0 = inlined_call_operand.hbm [shape: f32[4,512], index: 0, kind: input, shape index: {}]
  %s1 = inlined_call_operand.hbm [shape: f32[2,4], index: 1, kind: input, shape index: {}]
  %s2 = inlined_call_operand.vmem [shape: f32[2], index: 2, kind: input, shape index: {}]
  %s3 = inlined_call_operand.hbm [shape: f32[2,512], index: 3, kind: output, shape index: {}]
  %s4 = sld [smem:[#allocation0]]
  $region34: #{tpu_custom_call.1} parent=0
    _
  %s6 = ssub.s32 1, %s4
  %s7 = scalar_select 0, %s6, %s4
  $region1: #{tpu_custom_call.1} parent=0
    #allocation2 [shape = 'u8[8192]{0}', space=vmem, size = 0x2000, scoped, tag = 'input window, operand 0, single buffered']
    #allocation3 [shape = 's32[1]{0}', space=sflag, size = 0x4, scoped, tag = 'scoped memory for tpu_custom_call.1']
    #allocation4 [shape = 's32[1]{0}', space=sflag, size = 0x4, scoped, tag = 'scoped memory for tpu_custom_call.1']
    #allocation5 [shape = 's32[1]{0}', space=sflag, size = 0x4, scoped, tag = 'scoped memory for tpu_custom_call.1']
    #allocation6 [shape = 's32[1]{0}', space=sflag, size = 0x4, scoped, tag = 'scoped memory for tpu_custom_call.1']
    #allocation7 [shape = 'u8[1024]{0}', space=smem, size = 0x400, scoped, tag = 'input window, operand 1, single buffered']
    #allocation8 [shape = 'u8[512]{0}', space=smem, size = 0x200, scoped, tag = 'input window, operand 2, single buffered']
    #allocation9 [shape = 'u8[4096]{0}', space=vmem, size = 0x1000, scoped, tag = 'output window, operand 0, single buffered']
    %8 = vsyncpa [#allocation3], 0
    %9 = vsyncpa [#allocation5], 0
    %10 = vsyncpa [#allocation6], 0
    %11 = vsyncpa [#allocation4], 0
    // Predicated region
    $region2: #{tpu_custom_call.1} parent=1 // pred_check
      _
    $region3: #{tpu_custom_call.1} parent=1 // pred_check_branch
      %13 = sbr.rel (0) target = $region5
    $region4: #{tpu_custom_call.1} parent=1 // pred_region
      %s15 = ssub.s32 256, 256
      %16 = vsyncadd [#allocation3], %s15
      %s18 = sshll.u32 [#allocation2], 4
      %s19 = int_to_ptr.vmem [resolvable:$true] %s18
      %21 = dma.hbm_to_vmem [thread:$0]  %s0, 256, %s19, [#allocation3]
    $region5: #{tpu_custom_call.1} parent=1 // pred_fallthru
      _
    // Predicated region
    $region6: #{tpu_custom_call.1} parent=1 // pred_check
      _
    $region7: #{tpu_custom_call.1} parent=1 // pred_check_branch
      %23 = sbr.rel (0) target = $region9
    $region8: #{tpu_custom_call.1} parent=1 // pred_region
      %s25 = ssub.s32 32, 32
      %26 = vsyncadd [#allocation5], %s25
      %29 = dma.hbm_to_smem %s1, 32, [#allocation7], [#allocation5]
    $region9: #{tpu_custom_call.1} parent=1 // pred_fallthru
      _
    // Predicated region
    $region10: #{tpu_custom_call.1} parent=1 // pred_check
      _
    $region11: #{tpu_custom_call.1} parent=1 // pred_check_branch
      %31 = sbr.rel (0) target = $region13
    $region12: #{tpu_custom_call.1} parent=1 // pred_region
      %s33 = ssub.s32 16, 16
      %34 = vsyncadd [#allocation6], %s33
      %s36 = sshll.u32 %s2, 4
      %s37 = int_to_ptr.vmem [resolvable:$true] %s36
      %39 = dma.vmem_to_smem %s37, 16, [#allocation8], [#allocation6]
    $region13: #{tpu_custom_call.1} parent=1 // pred_fallthru
      _
    // Predicated region
    $region14: #{tpu_custom_call.1} parent=1 // pred_check
      _
    $region15: #{tpu_custom_call.1} parent=1 // pred_check_branch
      %41 = sbr.rel (0) target = $region17
    $region16: #{tpu_custom_call.1} parent=1 // pred_region
      %42 = dma.done [#allocation3], 256
    $region17: #{tpu_custom_call.1} parent=1 // pred_fallthru
      _
    // Predicated region
    $region18: #{tpu_custom_call.1} parent=1 // pred_check
      _
    $region19: #{tpu_custom_call.1} parent=1 // pred_check_branch
      %44 = sbr.rel (0) target = $region21
    $region20: #{tpu_custom_call.1} parent=1 // pred_region
      %45 = dma.done [#allocation5], 32
    $region21: #{tpu_custom_call.1} parent=1 // pred_fallthru
      _
    // Predicated region
    $region22: #{tpu_custom_call.1} parent=1 // pred_check
      _
    $region23: #{tpu_custom_call.1} parent=1 // pred_check_branch
      %47 = sbr.rel (0) target = $region25
    $region24: #{tpu_custom_call.1} parent=1 // pred_region
      %48 = dma.done [#allocation6], 16
    $region25: #{tpu_custom_call.1} parent=1 // pred_fallthru
      _
    %49 = sfence
    %v50 = vld [vmem:[#allocation2] ss:$4 sm:$0xf]
    %s51 = scalar_lea.vmem [#allocation2], 1
    %v52 = vld [vmem:[%s51] ss:$4 sm:$0xf]
    %s53 = scalar_lea.vmem [#allocation2], 2
    %v54 = vld [vmem:[%s53] ss:$4 sm:$0xf]
    %s55 = scalar_lea.vmem [#allocation2], 3
    %v56 = vld [vmem:[%s55] ss:$4 sm:$0xf]
    %s57 = sld [smem:[#allocation7]]
    %v58 = vstv %s57
    %v59 = vmul.f32 %v50, %v58
    %s60 = sld [smem:[#allocation8]]
    %v61 = vstv %s60
    %v62 = vadd.f32 %v59, %v61
    %s63 = sld [smem:[#allocation7 + $0x1]]
    %v64 = vstv %s63
    %v65 = vmul.f32 %v52, %v64
    %v66 = vadd.f32 %v62, %v65
    %s67 = sld [smem:[#allocation7 + $0x2]]
    %v68 = vstv %s67
    %v69 = vmul.f32 %v54, %v68
    %v70 = vadd.f32 %v66, %v69
    %s71 = sld [smem:[#allocation7 + $0x3]]
    %v72 = vstv %s71
    %v73 = vmul.f32 %v56, %v72
    %v74 = vadd.f32 %v70, %v73
    %v75 = vlaneseq
    %vm76 = vcmp.ge.s32.totalorder %v75, 0
    %vm77 = vcmp.lt.s32.totalorder %v75, 512
    %vm78 = vmand %vm76, %vm77
    %79 = vst.msk [vmem:[#allocation9] ss:$2 sm:$0xf] %vm78, %v74
    %s80 = sld [smem:[#allocation7 + $0x80]]
    %v81 = vstv %s80
    %v82 = vmul.f32 %v50, %v81
    %s83 = sld [smem:[#allocation8 + $0x1]]
    %v84 = vstv %s83
    %v85 = vadd.f32 %v82, %v84
    %s86 = sld [smem:[#allocation7 + $0x81]]
    %v87 = vstv %s86
    %v88 = vmul.f32 %v52, %v87
    %v89 = vadd.f32 %v85, %v88
    %s90 = sld [smem:[#allocation7 + $0x82]]
    %v91 = vstv %s90
    %v92 = vmul.f32 %v54, %v91
    %v93 = vadd.f32 %v89, %v92
    %s94 = sld [smem:[#allocation7 + $0x83]]
    %v95 = vstv %s94
    %v96 = vmul.f32 %v56, %v95
    %v97 = vadd.f32 %v93, %v96
    %s98 = scalar_lea.vmem [#allocation9], 1
    %99 = vst.msk [vmem:[%s98] ss:$2 sm:$0xf] %vm78, %v97
    // Predicated region
    $region26: #{tpu_custom_call.1} parent=1 // pred_check
      _
    $region27: #{tpu_custom_call.1} parent=1 // pred_check_branch
      %101 = sbr.rel (0) target = $region29
    $region28: #{tpu_custom_call.1} parent=1 // pred_region
      %s103 = ssub.s32 128, 128
      %104 = vsyncadd [#allocation4], %s103
      %s106 = sshll.u32 [#allocation9], 4
      %s107 = int_to_ptr.vmem [resolvable:$true] %s106
      %109 = dma.vmem_to_hbm [thread:$0]  %s107, 128, %s3, [#allocation4]
    $region29: #{tpu_custom_call.1} parent=1 // pred_fallthru
      _
    // Predicated region
    $region30: #{tpu_custom_call.1} parent=1 // pred_check
      _
    $region31: #{tpu_custom_call.1} parent=1 // pred_check_branch
      %111 = sbr.rel (0) target = $region33
    $region32: #{tpu_custom_call.1} parent=1 // pred_region
      %112 = dma.done [#allocation4], 128
    $region33: #{tpu_custom_call.1} parent=1 // pred_fallthru
      _
    %113 = vsyncpa [#allocation3], 1
    %114 = vsyncpa [#allocation4], 1
    %115 = vsyncpa [#allocation5], 1
    %116 = vsyncpa [#allocation6], 1

</llo_original>
